<compile_context>
chip_gen: v7x
topology: tpu7x:2x2x1
jax: 0.10.0
libtpu: 0.0.40
codegen_flags: <defaults>
</compile_context>

<pallas_src>
import jax
import jax.numpy as jnp
from jax.experimental import pallas as pl
from jax.experimental.pallas import tpu as pltpu

BATCH = 2
SEQ = 8                 # T (block_size of the bigram model)
N_EMBED = 32            # C
HIDDEN = 4 * N_EMBED    # 128 == one full lane width
TOKEN_TILE = 128        # M-tile for the gridded (large-batch) path


def _round_up(n, m):
    return ((n + m - 1) // m) * m


def _param_layout(C, H):
    """Sublane-aligned row offsets of w1 / b1 / w2 / b2 inside the packed buffer."""
    o_w1 = 0
    o_b1 = _round_up(C, 8)            # w1 rows, padded to a sublane tile
    o_w2 = o_b1 + 8                   # one sublane tile for b1
    o_b2 = o_w2 + _round_up(H, 8)     # w2 rows (lane-padded to H columns)
    rows = o_b2 + 8                   # one sublane tile for b2
    return o_w1, o_b1, o_w2, o_b2, rows


# ----------------------------- kernel -----------------------------
def _ffn_kernel(x_ref, p_ref, o_ref):
    """y = relu(x @ W1 + b1) @ W2 + b2 on one (M_tile, C) block of tokens."""
    C = x_ref.shape[-1]
    H = p_ref.shape[-1]
    o_w1, o_b1, o_w2, o_b2, _ = _param_layout(C, H)

    x = x_ref[...]                               # (M, C)  f32
    w1 = p_ref[o_w1:o_w1 + C, :]                 # (C, H)  f32
    b1 = p_ref[o_b1:o_b1 + 1, :]                 # (1, H)  f32
    w2 = p_ref[o_w2:o_w2 + H, :]                 # (H, H)  f32, cols >= C are zero
    b2 = p_ref[o_b2:o_b2 + 1, :]                 # (1, H)  f32, cols >= C are zero

    # bf16 MXU inputs, f32 accumulation; bias add + ReLU stay in f32 (v5e-safe).
    h = jnp.dot(x.astype(jnp.bfloat16), w1.astype(jnp.bfloat16),
                preferred_element_type=jnp.float32) + b1
    h = jnp.maximum(h, 0.0)
    y = jnp.dot(h.astype(jnp.bfloat16), w2.astype(jnp.bfloat16),
                preferred_element_type=jnp.float32) + b2   # (M, H), lane-dense
    o_ref[...] = y[:, :C].astype(o_ref.dtype)


# ----------------------------- wrapper -----------------------------
def feed_forward(x, packed_params, *, tm=TOKEN_TILE):
    """Pallas equivalent of FeedForward.forward(x) for x of shape (B, T, C)."""
    B, T, C = x.shape
    M = B * T
    rows, H = packed_params.shape
    x2d = x.reshape(M, C)

    itemsize = jnp.dtype(x.dtype).itemsize
    cost = pl.CostEstimate(
        flops=4 * M * C * H,                    # two (M,C,H)-sized matmuls (logical)
        transcendentals=0,
        bytes_accessed=(x2d.size + M * C) * itemsize + packed_params.size * 4,
    )
    vmem = pl.BlockSpec(memory_space=pltpu.MemorySpace.VMEM)

    if M <= tm:
        # Launch-bound regime: one gridless block, everything VMEM-resident.
        y2d = pl.pallas_call(
            _ffn_kernel,
            out_shape=jax.ShapeDtypeStruct((M, C), x.dtype),
            in_specs=[vmem, vmem],
            out_specs=vmem,
            cost_estimate=cost,
        )(x2d, packed_params)
        return y2d.reshape(B, T, C)

    # Large token count: 1-D parallel grid over tokens (both TensorCores on v7x),
    # packed params as a full-extent block so weights are fetched once.
    Mp = _round_up(M, tm)
    if Mp != M:
        x2d = jnp.pad(x2d, ((0, Mp - M), (0, 0)))
    y2d = pl.pallas_call(
        _ffn_kernel,
        out_shape=jax.ShapeDtypeStruct((Mp, C), x.dtype),
        grid_spec=pltpu.PrefetchScalarGridSpec(
            num_scalar_prefetch=0,
            grid=(Mp // tm,),
            in_specs=[pl.BlockSpec((tm, C), lambda i: (i, 0)),
                      pl.BlockSpec((rows, H), lambda i: (0, 0))],
            out_specs=pl.BlockSpec((tm, C), lambda i: (i, 0)),
        ),
        compiler_params=pltpu.CompilerParams(dimension_semantics=("parallel",)),
        cost_estimate=cost,
    )(x2d, packed_params)
    return y2d[:M].reshape(B, T, C)


# ----------------------------- params (nn.Linear-style init) -----------------------------
def make_params(key):
    C, H = N_EMBED, HIDDEN
    k1, k2, k3, k4 = jax.random.split(key, 4)

    def u(k, shape, fan_in):
        bound = 1.0 / (fan_in ** 0.5)
        return jax.random.uniform(k, shape, jnp.float32, -bound, bound)

    return {
        # stored pre-transposed to (in, out) so the kernel computes y = x @ W + b
        'w1': u(k1, (C, H), C),
        'b1': u(k2, (1, H), C),
        'w2': u(k3, (H, C), H),
        'b2': u(k4, (1, C), H),
    }


def pack_params(p):
    """Pack w1/b1/w2/b2 into one contiguous (rows, H) f32 buffer (single DMA)."""
    C, H = p['w1'].shape
    o_w1, o_b1, o_w2, o_b2, rows = _param_layout(C, H)
    buf = jnp.zeros((rows, H), jnp.float32)
    buf = buf.at[o_w1:o_w1 + C, :].set(p['w1'])
    buf = buf.at[o_b1, :].set(p['b1'].reshape(H))
    buf = buf.at[o_w2:o_w2 + H, :C].set(p['w2'])      # lane-pad w2 to width H
    buf = buf.at[o_b2, :C].set(p['b2'].reshape(C))
    return buf


# ----------------------------- pure-JAX reference -----------------------------
def feed_forward_ref(x, p):
    h = jnp.maximum(x @ p['w1'] + p['b1'], 0.0)
    return h @ p['w2'] + p['b2']


# ----------------------------- main -----------------------------
if __name__ == "__main__":
    key = jax.random.PRNGKey(0)
    k_params, k_x, k_x2 = jax.random.split(key, 3)
    params = make_params(k_params)
    packed = jax.block_until_ready(pack_params(params))

    # Small example consistent with the bigram model (gridless fast path).
    x = jax.random.normal(k_x, (BATCH, SEQ, N_EMBED), jnp.float32)
    y = jax.block_until_ready(feed_forward(x, packed))
    y_ref = feed_forward_ref(x, params)
    assert y.shape == (BATCH, SEQ, N_EMBED), y.shape
    assert jnp.all(jnp.isfinite(y))
    # bf16 MXU inputs with f32 accumulation -> relaxed tolerance.
    assert jnp.allclose(y, y_ref, atol=2e-2, rtol=2e-2), float(jnp.max(jnp.abs(y - y_ref)))

    # Larger token count exercising the gridded "parallel" path + pad/unpad.
    xb = jax.random.normal(k_x2, (33, SEQ, N_EMBED), jnp.float32)   # M = 264 -> 3 tiles
    yb = jax.block_until_ready(feed_forward(xb, packed))
    yb_ref = feed_forward_ref(xb, params)
    assert yb.shape == xb.shape
    assert jnp.allclose(yb, yb_ref, atol=2e-2, rtol=2e-2), float(jnp.max(jnp.abs(yb - yb_ref)))

    print("KERNEL_OK")
</pallas_src>

<mosaic_0001>
module attributes {stable_mosaic.version = 11 : i64} {
  func.func @_ffn_kernel(%arg0: memref<16x32xf32, #tpu.memory_space<vmem>>, %arg1: memref<176x128xf32, #tpu.memory_space<vmem>>, %arg2: memref<16x32xf32, #tpu.memory_space<vmem>>) attributes {dimension_semantics = [], scalar_prefetch = 0 : i64, scratch_operands = 0 : i64, tpu.core_type = #tpu.core_type<tc>} {
    %c0 = arith.constant 0 : index
    %c0_0 = arith.constant 0 : index
    %0 = vector.load %arg0[%c0, %c0_0] : memref<16x32xf32, #tpu.memory_space<vmem>>, vector<16x32xf32>
    %c0_1 = arith.constant 0 : index
    %c0_2 = arith.constant 0 : index
    %1 = vector.load %arg1[%c0_1, %c0_2] : memref<176x128xf32, #tpu.memory_space<vmem>>, vector<32x128xf32>
    %c32 = arith.constant 32 : index
    %c0_3 = arith.constant 0 : index
    %2 = vector.load %arg1[%c32, %c0_3] : memref<176x128xf32, #tpu.memory_space<vmem>>, vector<1x128xf32>
    %c40 = arith.constant 40 : index
    %c0_4 = arith.constant 0 : index
    %3 = vector.load %arg1[%c40, %c0_4] : memref<176x128xf32, #tpu.memory_space<vmem>>, vector<128x128xf32>
    %c168 = arith.constant 168 : index
    %c0_5 = arith.constant 0 : index
    %4 = vector.load %arg1[%c168, %c0_5] : memref<176x128xf32, #tpu.memory_space<vmem>>, vector<1x128xf32>
    %5 = arith.truncf %0 : vector<16x32xf32> to vector<16x32xbf16>
    %6 = arith.truncf %1 : vector<32x128xf32> to vector<32x128xbf16>
    %cst = arith.constant dense<0.000000e+00> : vector<16x128xf32>
    %7 = tpu.matmul %5, %6, %cst {dimension_numbers = #tpu.dot_dimension_numbers<[1], [0], [0], [1], [0, 0, 1, 1], [], []>} : vector<16x32xbf16>, vector<32x128xbf16>, vector<16x128xf32> -> vector<16x128xf32>
    %8 = vector.broadcast %2 : vector<1x128xf32> to vector<16x128xf32>
    %9 = arith.addf %7, %8 : vector<16x128xf32>
    %cst_6 = arith.constant 0.000000e+00 : f32
    %10 = vector.broadcast %cst_6 : f32 to vector<16x128xf32>
    %11 = arith.maximumf %9, %10 : vector<16x128xf32>
    %12 = arith.truncf %11 : vector<16x128xf32> to vector<16x128xbf16>
    %13 = arith.truncf %3 : vector<128x128xf32> to vector<128x128xbf16>
    %cst_7 = arith.constant dense<0.000000e+00> : vector<16x128xf32>
    %14 = tpu.matmul %12, %13, %cst_7 {dimension_numbers = #tpu.dot_dimension_numbers<[1], [0], [0], [1], [0, 0, 1, 1], [], []>} : vector<16x128xbf16>, vector<128x128xbf16>, vector<16x128xf32> -> vector<16x128xf32>
    %15 = vector.broadcast %4 : vector<1x128xf32> to vector<16x128xf32>
    %16 = arith.addf %14, %15 : vector<16x128xf32>
    %17 = vector.extract_strided_slice %16 {offsets = [0, 0], sizes = [16, 32], strides = [1, 1]} : vector<16x128xf32> to vector<16x32xf32>
    %c0_8 = arith.constant 0 : index
    %c0_9 = arith.constant 0 : index
    %18 = vector.load %arg2[%c0_8, %c0_9] : memref<16x32xf32, #tpu.memory_space<vmem>>, vector<16x32xf32>
    tpu.vector_store %arg2[%c0_8, %c0_9], %17 {strides = array<i32>} : memref<16x32xf32, #tpu.memory_space<vmem>>, vector<16x32xf32>,
    return
  }
}

</mosaic_0001>

<llo_original>
// kernel: tpu_custom_call.1
$region0: #{tpu_custom_call.1}
  #allocation0 [shape = 'u32[]', space=smem, size = 0x4, offset = 0x4, fixed_abs, tag = 'smem constant byte address 0x4 - core index']
  #allocation1 [shape = 'u32[144,128]{1,0:T(1,128)}', space=vmem, size = 0x12000, scoped, tag = 'internal scratch']
  %s0 = inlined_call_operand.hbm [shape: f32[16,32], index: 0, kind: input, shape index: {}]
  %s1 = inlined_call_operand.hbm [shape: f32[176,128], index: 1, kind: input, shape index: {}]
  %s2 = inlined_call_operand.hbm [shape: f32[16,32], index: 2, kind: output, shape index: {}]
  %s3 = sld [smem:[#allocation0]]
  $region26: #{tpu_custom_call.1} parent=0
    _
  %s5 = ssub.s32 1, %s3
  %s6 = scalar_select 0, %s5, %s3
  $region1: #{tpu_custom_call.1} parent=0
    #allocation2 [shape = 'u8[8192]{0}', space=vmem, size = 0x2000, scoped, tag = 'input window, operand 0, single buffered']
    #allocation3 [shape = 's32[1]{0}', space=sflag, size = 0x4, scoped, tag = 'scoped memory for tpu_custom_call.1']
    #allocation4 [shape = 's32[1]{0}', space=sflag, size = 0x4, scoped, tag = 'scoped memory for tpu_custom_call.1']
    #allocation5 [shape = 'u8[90112]{0}', space=vmem, size = 0x16000, scoped, tag = 'input window, operand 1, single buffered']
    #allocation6 [shape = 's32[1]{0}', space=sflag, size = 0x4, scoped, tag = 'scoped memory for tpu_custom_call.1']
    #allocation7 [shape = 'u8[8192]{0}', space=vmem, size = 0x2000, scoped, tag = 'output window, operand 0, single buffered']
    %7 = vsyncpa [#allocation3], 0
    %8 = vsyncpa [#allocation6], 0
    %9 = vsyncpa [#allocation4], 0
    // Predicated region
    $region2: #{tpu_custom_call.1} parent=1 // pred_check
      _
    $region3: #{tpu_custom_call.1} parent=1 // pred_check_branch
      %11 = sbr.rel (0) target = $region5
    $region4: #{tpu_custom_call.1} parent=1 // pred_region
      %s13 = ssub.s32 256, 256
      %14 = vsyncadd [#allocation3], %s13
      %s15 = sshll.u32 [#allocation2], 4
      %s16 = int_to_ptr.vmem [resolvable:$true] %s15
      %21 = dma.hbm_to_vmem [thread:$0]  %s0, 256, %s16, [#allocation3], 128, 128, 8
    $region5: #{tpu_custom_call.1} parent=1 // pred_fallthru
      _
    // Predicated region
    $region6: #{tpu_custom_call.1} parent=1 // pred_check
      _
    $region7: #{tpu_custom_call.1} parent=1 // pred_check_branch
      %23 = sbr.rel (0) target = $region9
    $region8: #{tpu_custom_call.1} parent=1 // pred_region
      %s25 = ssub.s32 2816, 2816
      %26 = vsyncadd [#allocation6], %s25
      %s27 = sshll.u32 [#allocation5], 4
      %s28 = int_to_ptr.vmem [resolvable:$true] %s27
      %33 = dma.hbm_to_vmem [thread:$0]  %s1, 2816, %s28, [#allocation6], 128, 128, 8
    $region9: #{tpu_custom_call.1} parent=1 // pred_fallthru
      _
    // Predicated region
    $region10: #{tpu_custom_call.1} parent=1 // pred_check
      _
    $region11: #{tpu_custom_call.1} parent=1 // pred_check_branch
      %35 = sbr.rel (0) target = $region13
    $region12: #{tpu_custom_call.1} parent=1 // pred_region
      %36 = dma.done [#allocation3], 256
    $region13: #{tpu_custom_call.1} parent=1 // pred_fallthru
      _
    // Predicated region
    $region14: #{tpu_custom_call.1} parent=1 // pred_check
      _
    $region15: #{tpu_custom_call.1} parent=1 // pred_check_branch
      %38 = sbr.rel (0) target = $region17
    $region16: #{tpu_custom_call.1} parent=1 // pred_region
      %39 = dma.done [#allocation6], 2816
    $region17: #{tpu_custom_call.1} parent=1 // pred_fallthru
      _
    %v41 = vld [vmem:[#allocation2] sm:$0xff]
    %v42 = vld [vmem:[#allocation2 + $0x8] sm:$0xff]
    %v43 = vld [vmem:[#allocation5] sm:$0xff]
    %v44 = vld [vmem:[#allocation5 + $0x8] sm:$0xff]
    %v45 = vld [vmem:[#allocation5 + $0x10] sm:$0xff]
    %v46 = vld [vmem:[#allocation5 + $0x18] sm:$0xff]
    %v47 = vld [vmem:[#allocation5 + $0x20] sm:$0x1]
    %v48 = vld [vmem:[#allocation5 + $0x28] sm:$0xff]
    %v49 = vld [vmem:[#allocation5 + $0x30] sm:$0xff]
    %v50 = vld [vmem:[#allocation5 + $0x38] sm:$0xff]
    %v51 = vld [vmem:[#allocation5 + $0x40] sm:$0xff]
    %v52 = vld [vmem:[#allocation5 + $0x48] sm:$0xff]
    %v53 = vld [vmem:[#allocation5 + $0x50] sm:$0xff]
    %v54 = vld [vmem:[#allocation5 + $0x58] sm:$0xff]
    %v55 = vld [vmem:[#allocation5 + $0x60] sm:$0xff]
    %v56 = vld [vmem:[#allocation5 + $0x68] sm:$0xff]
    %v57 = vld [vmem:[#allocation5 + $0x70] sm:$0xff]
    %v58 = vld [vmem:[#allocation5 + $0x78] sm:$0xff]
    %v59 = vld [vmem:[#allocation5 + $0x80] sm:$0xff]
    %v60 = vld [vmem:[#allocation5 + $0x88] sm:$0xff]
    %v61 = vld [vmem:[#allocation5 + $0x90] sm:$0xff]
    %v62 = vld [vmem:[#allocation5 + $0x98] sm:$0xff]
    %v63 = vld [vmem:[#allocation5 + $0xa0] sm:$0xff]
    %v64 = vld [vmem:[#allocation5 + $0xa8] sm:$0x1]
    %v65 = vpack.c.bf16 %v42, %v41
    %v66 = vpack.c.bf16 %v44, %v43
    %v67 = vpack.c.bf16 %v46, %v45
    %v68 = vlaneseq
    %v69 = vshrl.u32 %v68, 7
    %v70 = vsub.s32 0, %v69
    %v71 = vrot.slane %v47, %v70
    %vm72 = vcmask 261120
    %v74 = vsel %vm72, %v65, 0
    %76 = vmatprep.subr.bf16.mxu0 0
    %77 = vmatpush1.bf16.msra.mxu0 %v66
    %78 = vmatprep.subr.bf16.mxu0 0
    %79 = vmatpush1.bf16.msra.mxu0 %v67
    %80 = vmatprep.subr.bf16.mxu0 0
    %81 = vmatpush1.bf16.msra.mxu0 0
    %82 = vmatprep.subr.bf16.mxu0 0
    %83 = vmatpush1.bf16.msra.mxu0 0
    %84 = vmatprep.subr.bf16.mxu0 0
    %85 = vmatpush1.bf16.msra.mxu0 0
    %86 = vmatprep.subr.bf16.mxu0 0
    %87 = vmatpush1.bf16.msra.mxu0 0
    %88 = vmatprep.subr.bf16.mxu0 0
    %89 = vmatpush1.bf16.msra.mxu0 0
    %90 = vmatprep.subr.bf16.mxu0 0
    %91 = vmatpush1.bf16.msra.mxu0 0
    %92 = vmatprep.subr.bf16.mxu0 0
    %93 = vmatpush1.bf16.msra.mxu0 0
    %94 = vmatprep.subr.bf16.mxu0 0
    %95 = vmatpush1.bf16.msra.mxu0 0
    %96 = vmatprep.subr.bf16.mxu0 0
    %97 = vmatpush1.bf16.msra.mxu0 0
    %98 = vmatprep.subr.bf16.mxu0 0
    %99 = vmatpush1.bf16.msra.mxu0 0
    %100 = vmatprep.subr.bf16.mxu0 0
    %101 = vmatpush1.bf16.msra.mxu0 0
    %102 = vmatprep.subr.bf16.mxu0 0
    %103 = vmatpush1.bf16.msra.mxu0 0
    %104 = vmatprep.subr.bf16.mxu0 0
    %105 = vmatpush1.bf16.msra.mxu0 0
    %106 = vmatprep.subr.bf16.mxu0 0
    %107 = vmatpush1.bf16.msra.mxu0 0
    %108 = vmatprep.mubr.bf16.mxu0 0
    %109 = vmatmul.mubr.bf16.gmra.mrb[0].mxu0 %v74
    %v110 = vpop.f32.mrb[0].mxu0
    %v111 = vadd.f32 %v71, %v110
    %v112 = vpop.f32.mrb[0].mxu0
    %v113 = vpop.f32.mrb[0].mxu0
    %v114 = vadd.f32 %v71, %v113
    %v115 = vpop.f32.mrb[0].mxu0
    %116 = vdwg.mxu0
    %v117 = vmax.f32 %v111, 0.0
    %v118 = vmax.f32 %v114, 0.0
    %v119 = vpack.c.bf16 %v118, %v117
    %v120 = vpack.c.bf16 %v49, %v48
    %v121 = vpack.c.bf16 %v51, %v50
    %v122 = vpack.c.bf16 %v53, %v52
    %v123 = vpack.c.bf16 %v55, %v54
    %v124 = vpack.c.bf16 %v57, %v56
    %v125 = vpack.c.bf16 %v59, %v58
    %v126 = vpack.c.bf16 %v61, %v60
    %v127 = vpack.c.bf16 %v63, %v62
    %v128 = vlaneseq
    %v129 = vshrl.u32 %v128, 7
    %v130 = vsub.s32 0, %v129
    %v131 = vrot.slane %v64, %v130
    %132 = vmatprep.subr.bf16.mxu0 0
    %133 = vmatpush1.bf16.msra.mxu0 %v120
    %134 = vmatprep.subr.bf16.mxu0 0
    %135 = vmatpush1.bf16.msra.mxu0 %v121
    %136 = vmatprep.subr.bf16.mxu0 0
    %137 = vmatpush1.bf16.msra.mxu0 %v122
    %138 = vmatprep.subr.bf16.mxu0 0
    %139 = vmatpush1.bf16.msra.mxu0 %v123
    %140 = vmatprep.subr.bf16.mxu0 0
    %141 = vmatpush1.bf16.msra.mxu0 %v124
    %142 = vmatprep.subr.bf16.mxu0 0
    %143 = vmatpush1.bf16.msra.mxu0 %v125
    %144 = vmatprep.subr.bf16.mxu0 0
    %145 = vmatpush1.bf16.msra.mxu0 %v126
    %146 = vmatprep.subr.bf16.mxu0 0
    %147 = vmatpush1.bf16.msra.mxu0 %v127
    %148 = vmatprep.subr.bf16.mxu0 0
    %149 = vmatpush1.bf16.msra.mxu0 0
    %150 = vmatprep.subr.bf16.mxu0 0
    %151 = vmatpush1.bf16.msra.mxu0 0
    %152 = vmatprep.subr.bf16.mxu0 0
    %153 = vmatpush1.bf16.msra.mxu0 0
    %154 = vmatprep.subr.bf16.mxu0 0
    %155 = vmatpush1.bf16.msra.mxu0 0
    %156 = vmatprep.subr.bf16.mxu0 0
    %157 = vmatpush1.bf16.msra.mxu0 0
    %158 = vmatprep.subr.bf16.mxu0 0
    %159 = vmatpush1.bf16.msra.mxu0 0
    %160 = vmatprep.subr.bf16.mxu0 0
    %161 = vmatpush1.bf16.msra.mxu0 0
    %162 = vmatprep.subr.bf16.mxu0 0
    %163 = vmatpush1.bf16.msra.mxu0 0
    %164 = vmatprep.mubr.bf16.mxu0 0
    %165 = vmatmul.mubr.bf16.gmra.mrb[0].mxu0 %v119
    %v166 = vpop.f32.mrb[0].mxu0
    %v167 = vadd.f32 %v131, %v166
    %v168 = vpop.f32.mrb[0].mxu0
    %v169 = vpop.f32.mrb[0].mxu0
    %v170 = vadd.f32 %v131, %v169
    %v171 = vpop.f32.mrb[0].mxu0
    %172 = vdwg.mxu0
    %173 = vst.msk [vmem:[#allocation7] sm:$0xff] %vm72, %v167
    %174 = vst.msk [vmem:[#allocation7 + $0x8] sm:$0xff] %vm72, %v170
    // Predicated region
    $region18: #{tpu_custom_call.1} parent=1 // pred_check
      _
    $region19: #{tpu_custom_call.1} parent=1 // pred_check_branch
      %176 = sbr.rel (0) target = $region21
    $region20: #{tpu_custom_call.1} parent=1 // pred_region
      %s178 = ssub.s32 256, 256
      %179 = vsyncadd [#allocation4], %s178
      %s180 = sshll.u32 [#allocation7], 4
      %s181 = int_to_ptr.vmem [resolvable:$true] %s180
      %186 = dma.vmem_to_hbm [thread:$0]  %s181, 256, %s2, [#allocation4], 128, 128, 8
    $region21: #{tpu_custom_call.1} parent=1 // pred_fallthru
      _
    // Predicated region
    $region22: #{tpu_custom_call.1} parent=1 // pred_check
      _
    $region23: #{tpu_custom_call.1} parent=1 // pred_check_branch
      %188 = sbr.rel (0) target = $region25
    $region24: #{tpu_custom_call.1} parent=1 // pred_region
      %189 = dma.done [#allocation4], 256
    $region25: #{tpu_custom_call.1} parent=1 // pred_fallthru
      _
    %190 = vsyncpa [#allocation3], 1
    %191 = vsyncpa [#allocation6], 1
    %192 = vsyncpa [#allocation4], 1

</llo_original>
